<compile_context>
chip_gen: v6e
topology: v6e:2x2x1
jax: 0.10.0
libtpu: 0.0.40
codegen_flags: <defaults>
</compile_context>

<pallas_src>
import functools

import numpy as np
import jax
import jax.numpy as jnp
from jax.experimental import pallas as pl
from jax.experimental.pallas import tpu as pltpu


def knowledge_encoder_kernel(x_ref, w_ref, b_ref, o_ref,
                             *, block_b, set_size, d_in, d_pad):
    TB, S = block_b, set_size

    # x block: (TB*S, d_in) -- TB batch elements, set dim flattened into the rows.
    x = x_ref[...]

    # Static, sublane-aligned slices of the consolidated weight slab.
    w1 = w_ref[0:d_in, :]                              # (d_in, d_pad)   h1 first linear
    wa = w_ref[d_in:d_in + d_pad, :]                   # (d_pad, d_pad)  fused w1b @ w2a
    wb = w_ref[d_in + d_pad:d_in + 2 * d_pad, :]       # (d_pad, d_pad)  fused w2b @ w3

    bias = b_ref[...]                                  # (8, d_pad)
    b1 = bias[0:1, :]
    ba = bias[1:2, :]
    bb = bias[2:3, :]

    # ---- h1 first linear + ReLU, row-batched over all TB*S set elements ----
    h = jnp.dot(x, w1, preferred_element_type=jnp.float32) + b1
    h = jnp.maximum(h, 0.0)                            # (TB*S, d_pad)

    # ---- set-sum via sublane reduction (free retile when S % 8 == 0) ----
    hsum = h.reshape(TB, S, d_pad).sum(axis=1)         # (TB, d_pad)

    # ---- fused (h1 second linear ∘ h2 first linear) + ReLU ----
    h2 = jnp.maximum(jnp.dot(hsum, wa, preferred_element_type=jnp.float32) + ba, 0.0)

    # ---- fused (h2 second linear ∘ knowledge_encoder linear) ----
    out = jnp.dot(h2, wb, preferred_element_type=jnp.float32) + bb      # (TB, d_pad)

    o_ref[...] = out.astype(o_ref.dtype)               # lane-dense (TB, 128) store


def _fuse_params(params, set_size, d_pad):
    """Fold the ReLU-free linear chains and pad everything to d_pad lanes (exact algebra)."""
    hi = jax.lax.Precision.HIGHEST
    d_in = params["w1a"].shape[0]
    d = params["w3"].shape[1]

    wa = jnp.dot(params["w1b"], params["w2a"], precision=hi)                     # (d, d)
    ba = float(set_size) * jnp.dot(params["b1b"], params["w2a"], precision=hi) + params["b2a"]
    wb = jnp.dot(params["w2b"], params["w3"], precision=hi)                      # (d, d)
    bb = jnp.dot(params["b2b"], params["w3"], precision=hi) + params["b3"]

    w1_p = jnp.pad(params["w1a"], ((0, 0), (0, d_pad - d)))                      # (d_in, d_pad)
    wa_p = jnp.pad(wa, ((0, d_pad - d), (0, d_pad - d)))                         # (d_pad, d_pad)
    wb_p = jnp.pad(wb, ((0, d_pad - d), (0, d_pad - d)))                         # (d_pad, d_pad)
    w_slab = jnp.concatenate([w1_p, wa_p, wb_p], axis=0).astype(jnp.float32)     # (d_in+2*d_pad, d_pad)

    b_slab = jnp.zeros((8, d_pad), jnp.float32)
    b_slab = b_slab.at[0, :d].set(params["b1a"][0])
    b_slab = b_slab.at[1, :d].set(ba[0])
    b_slab = b_slab.at[2, :d].set(bb[0])
    return w_slab, b_slab


def knowledge_encoder(knowledge, params, *, block_b=None):
    """knowledge: (B, S, D_in) float32.  Returns (B, 1, D_rep)."""
    B, S, D_in = knowledge.shape
    D = params["w3"].shape[1]
    Dp = ((D + 127) // 128) * 128        # lane-dense width (128 for D=32)

    # Batch tile: ~4096 rows of (block_b*S, D_in) per grid step keeps per-step overhead
    # negligible; large B naturally gives >= 2 "parallel" steps (v7x megacore sharding).
    if block_b is None:
        rows_target = 4096
        cap = max(8, ((rows_target // max(S, 1)) // 8) * 8)
        block_b = B if B <= cap else cap
    else:
        block_b = min(block_b, B)
    assert block_b == B or block_b % 8 == 0, "block_b must be a multiple of 8 (or == B)"

    # No padded HBM copy of the input: partial trailing block is masked by Pallas, and pad
    # garbage can only feed output rows >= B, which are never written back.
    grid_b = pl.cdiv(B, block_b)

    x2 = knowledge.reshape(B * S, D_in).astype(jnp.float32)   # free, row-major reshape
    w_slab, b_slab = _fuse_params(params, S, Dp)

    kernel = functools.partial(knowledge_encoder_kernel,
                               block_b=block_b, set_size=S, d_in=D_in, d_pad=Dp)

    flops = int(2 * B * S * D_in * Dp + 4 * B * Dp * Dp)
    bytes_accessed = int(4 * (x2.size + w_slab.size + b_slab.size + B * Dp))

    out_pad = pl.pallas_call(
        kernel,
        out_shape=jax.ShapeDtypeStruct((B, Dp), jnp.float32),
        grid_spec=pltpu.PrefetchScalarGridSpec(
            num_scalar_prefetch=0,
            grid=(grid_b,),
            in_specs=[
                pl.BlockSpec((block_b * S, D_in), lambda b: (b, 0)),
                pl.BlockSpec(w_slab.shape, lambda b: (0, 0)),   # grid-invariant weight slab
                pl.BlockSpec(b_slab.shape, lambda b: (0, 0)),   # grid-invariant bias slab
            ],
            out_specs=pl.BlockSpec((block_b, Dp), lambda b: (b, 0)),
        ),
        compiler_params=pltpu.CompilerParams(
            dimension_semantics=("parallel",)),
        cost_estimate=pl.CostEstimate(flops=flops, transcendentals=0,
                                      bytes_accessed=bytes_accessed),
    )(x2, w_slab, b_slab)

    return out_pad[:, :D].reshape(B, 1, D)


def init_params(key, d_in, d_rep):
    ks = jax.random.split(key, 10)
    scale = 0.1
    return {
        # h1 MLP (SetEmbedding): Linear(d_in, d_rep) -> ReLU -> Linear(d_rep, d_rep)
        "w1a": scale * jax.random.normal(ks[0], (d_in, d_rep), jnp.float32),
        "b1a": scale * jax.random.normal(ks[1], (1, d_rep), jnp.float32),
        "w1b": scale * jax.random.normal(ks[2], (d_rep, d_rep), jnp.float32),
        "b1b": scale * jax.random.normal(ks[3], (1, d_rep), jnp.float32),
        # h2 MLP (SetEmbedding): Linear(d_rep, d_rep) -> ReLU -> Linear(d_rep, d_rep)
        "w2a": scale * jax.random.normal(ks[4], (d_rep, d_rep), jnp.float32),
        "b2a": scale * jax.random.normal(ks[5], (1, d_rep), jnp.float32),
        "w2b": scale * jax.random.normal(ks[6], (d_rep, d_rep), jnp.float32),
        "b2b": scale * jax.random.normal(ks[7], (1, d_rep), jnp.float32),
        # knowledge_encoder: Linear(d_rep, d_rep)
        "w3": scale * jax.random.normal(ks[8], (d_rep, d_rep), jnp.float32),
        "b3": scale * jax.random.normal(ks[9], (1, d_rep), jnp.float32),
    }


def reference_forward(x, p):
    """Pure-JAX reference matching the PyTorch forward."""
    h = jnp.maximum(x @ p["w1a"] + p["b1a"], 0.0)
    ks = h @ p["w1b"] + p["b1b"]                       # (B, S, D)
    k = jnp.sum(ks, axis=1, keepdims=True)             # (B, 1, D)
    h2 = jnp.maximum(k @ p["w2a"] + p["b2a"], 0.0)
    k2 = h2 @ p["w2b"] + p["b2b"]                      # (B, 1, D)
    out = k2 @ p["w3"] + p["b3"]                       # (B, 1, D)
    return out


if __name__ == "__main__":
    B, S, D_IN, D_REP = 2, 8, 32, 32
    key = jax.random.PRNGKey(0)
    k_x, k_p = jax.random.split(key)

    knowledge = jax.random.normal(k_x, (B, S, D_IN), jnp.float32)
    params = init_params(k_p, D_IN, D_REP)

    out = jax.block_until_ready(knowledge_encoder(knowledge, params))
    ref = reference_forward(knowledge, params)
    np.testing.assert_allclose(np.asarray(out), np.asarray(ref), rtol=1e-4, atol=1e-4)
    assert out.shape == (B, 1, D_REP)

    # Multi-grid-step path with a masked partial trailing block (B=600 -> blocks of 512, 88).
    B2 = 600
    knowledge2 = jax.random.normal(jax.random.PRNGKey(1), (B2, S, D_IN), jnp.float32)
    out2 = jax.block_until_ready(knowledge_encoder(knowledge2, params))
    ref2 = reference_forward(knowledge2, params)
    np.testing.assert_allclose(np.asarray(out2), np.asarray(ref2), rtol=1e-4, atol=1e-4)
    assert out2.shape == (B2, 1, D_REP)

    # Explicit small block_b (two steps, partial trailing block of 18 rows).
    B3 = 50
    knowledge3 = jax.random.normal(jax.random.PRNGKey(2), (B3, S, D_IN), jnp.float32)
    out3 = jax.block_until_ready(knowledge_encoder(knowledge3, params, block_b=32))
    ref3 = reference_forward(knowledge3, params)
    np.testing.assert_allclose(np.asarray(out3), np.asarray(ref3), rtol=1e-4, atol=1e-4)
    assert out3.shape == (B3, 1, D_REP)

    print("KERNEL_OK")
</pallas_src>

<mosaic_0001>
module attributes {stable_mosaic.version = 11 : i64} {
  func.func @knowledge_encoder_kernel(%arg0: i32, %arg1: memref<16x32xf32, #tpu.memory_space<vmem>>, %arg2: memref<288x128xf32, #tpu.memory_space<vmem>>, %arg3: memref<8x128xf32, #tpu.memory_space<vmem>>, %arg4: memref<2x128xf32, #tpu.memory_space<vmem>>) attributes {dimension_semantics = [#tpu.dimension_semantics<parallel>], iteration_bounds = array<i64: 1>, scalar_prefetch = 0 : i64, scratch_operands = 0 : i64, tpu.core_type = #tpu.core_type<tc>, window_params = [{transform_indices = @transform_0, window_bounds = array<i64: 16, 32>}, {pipeline_mode = #tpu.pipeline_mode<synchronous>, transform_indices = @transform_1, window_bounds = array<i64: 288, 128>}, {pipeline_mode = #tpu.pipeline_mode<synchronous>, transform_indices = @transform_2, window_bounds = array<i64: 8, 128>}, {transform_indices = @transform_3, window_bounds = array<i64: 2, 128>}]} {
    %c0 = arith.constant 0 : index
    %c0_0 = arith.constant 0 : index
    %0 = vector.load %arg1[%c0, %c0_0] : memref<16x32xf32, #tpu.memory_space<vmem>>, vector<16x32xf32>
    %c0_1 = arith.constant 0 : index
    %c0_2 = arith.constant 0 : index
    %1 = vector.load %arg2[%c0_1, %c0_2] : memref<288x128xf32, #tpu.memory_space<vmem>>, vector<32x128xf32>
    %c32 = arith.constant 32 : index
    %c0_3 = arith.constant 0 : index
    %2 = vector.load %arg2[%c32, %c0_3] : memref<288x128xf32, #tpu.memory_space<vmem>>, vector<128x128xf32>
    %c160 = arith.constant 160 : index
    %c0_4 = arith.constant 0 : index
    %3 = vector.load %arg2[%c160, %c0_4] : memref<288x128xf32, #tpu.memory_space<vmem>>, vector<128x128xf32>
    %c0_5 = arith.constant 0 : index
    %c0_6 = arith.constant 0 : index
    %4 = vector.load %arg3[%c0_5, %c0_6] : memref<8x128xf32, #tpu.memory_space<vmem>>, vector<8x128xf32>
    %5 = vector.extract_strided_slice %4 {offsets = [0, 0], sizes = [1, 128], strides = [1, 1]} : vector<8x128xf32> to vector<1x128xf32>
    %6 = vector.extract_strided_slice %4 {offsets = [1, 0], sizes = [1, 128], strides = [1, 1]} : vector<8x128xf32> to vector<1x128xf32>
    %7 = vector.extract_strided_slice %4 {offsets = [2, 0], sizes = [1, 128], strides = [1, 1]} : vector<8x128xf32> to vector<1x128xf32>
    %cst = arith.constant dense<0.000000e+00> : vector<16x128xf32>
    %8 = tpu.matmul %0, %1, %cst {dimension_numbers = #tpu.dot_dimension_numbers<[1], [0], [0], [1], [0, 0, 1, 1], [], []>} : vector<16x32xf32>, vector<32x128xf32>, vector<16x128xf32> -> vector<16x128xf32>
    %9 = vector.broadcast %5 : vector<1x128xf32> to vector<16x128xf32>
    %10 = arith.addf %8, %9 : vector<16x128xf32>
    %cst_7 = arith.constant 0.000000e+00 : f32
    %11 = vector.broadcast %cst_7 : f32 to vector<16x128xf32>
    %12 = arith.maximumf %10, %11 : vector<16x128xf32>
    %13 = vector.shape_cast %12 : vector<16x128xf32> to vector<2x8x128xf32>
    %cst_8 = arith.constant dense<0.000000e+00> : vector<2x128xf32>
    %14 = vector.multi_reduction <add>, %13, %cst_8 [1] : vector<2x8x128xf32> to vector<2x128xf32>
    %cst_9 = arith.constant dense<0.000000e+00> : vector<2x128xf32>
    %15 = tpu.matmul %14, %2, %cst_9 {dimension_numbers = #tpu.dot_dimension_numbers<[1], [0], [0], [1], [0, 0, 1, 1], [], []>} : vector<2x128xf32>, vector<128x128xf32>, vector<2x128xf32> -> vector<2x128xf32>
    %16 = vector.broadcast %6 : vector<1x128xf32> to vector<2x128xf32>
    %17 = arith.addf %15, %16 : vector<2x128xf32>
    %cst_10 = arith.constant 0.000000e+00 : f32
    %18 = vector.broadcast %cst_10 : f32 to vector<2x128xf32>
    %19 = arith.maximumf %17, %18 : vector<2x128xf32>
    %cst_11 = arith.constant dense<0.000000e+00> : vector<2x128xf32>
    %20 = tpu.matmul %19, %3, %cst_11 {dimension_numbers = #tpu.dot_dimension_numbers<[1], [0], [0], [1], [0, 0, 1, 1], [], []>} : vector<2x128xf32>, vector<128x128xf32>, vector<2x128xf32> -> vector<2x128xf32>
    %21 = vector.broadcast %7 : vector<1x128xf32> to vector<2x128xf32>
    %22 = arith.addf %20, %21 : vector<2x128xf32>
    %c0_12 = arith.constant 0 : index
    %c0_13 = arith.constant 0 : index
    %23 = vector.load %arg4[%c0_12, %c0_13] : memref<2x128xf32, #tpu.memory_space<vmem>>, vector<2x128xf32>
    tpu.vector_store %arg4[%c0_12, %c0_13], %22 {strides = array<i32>} : memref<2x128xf32, #tpu.memory_space<vmem>>, vector<2x128xf32>,
    return
  }
  func.func @transform_0(%arg0: i32) -> (i32, i32) {
    %c0_i32 = arith.constant 0 : i32
    %c0_i32_0 = arith.constant 0 : i32
    return %arg0, %c0_i32 : i32, i32
  }
  func.func @transform_1(%arg0: i32) -> (i32, i32) {
    %c0_i32 = arith.constant 0 : i32
    %c0_i32_0 = arith.constant 0 : i32
    %c0_i32_1 = arith.constant 0 : i32
    return %c0_i32, %c0_i32_0 : i32, i32
  }
  func.func @transform_2(%arg0: i32) -> (i32, i32) {
    %c0_i32 = arith.constant 0 : i32
    %c0_i32_0 = arith.constant 0 : i32
    %c0_i32_1 = arith.constant 0 : i32
    return %c0_i32, %c0_i32_0 : i32, i32
  }
  func.func @transform_3(%arg0: i32) -> (i32, i32) {
    %c0_i32 = arith.constant 0 : i32
    %c0_i32_0 = arith.constant 0 : i32
    return %arg0, %c0_i32 : i32, i32
  }
}

</mosaic_0001>

<llo_original>
// kernel: tpu_custom_call.1
$region0: #{tpu_custom_call.1}
  #allocation0 [shape = 'u32[]', space=smem, size = 0x4, offset = 0x4, fixed_abs, tag = 'smem constant byte address 0x4 - core index']
  #allocation1 [shape = 'u32[144,128]{1,0:T(1,128)}', space=vmem, size = 0x12000, scoped, tag = 'internal scratch']
  %s0 = inlined_call_operand.hbm [shape: f32[16,32], index: 0, kind: input, shape index: {}]
  %s1 = inlined_call_operand.hbm [shape: f32[288,128], index: 1, kind: input, shape index: {}]
  %s2 = inlined_call_operand.hbm [shape: f32[8,128], index: 2, kind: input, shape index: {}]
  %s3 = inlined_call_operand.hbm [shape: f32[2,128], index: 3, kind: output, shape index: {}]
  %s4 = sld [smem:[#allocation0]]
  $region34: #{tpu_custom_call.1} parent=0
    _
  %s6 = ssub.s32 1, %s4
  %s7 = scalar_select 0, %s6, %s4
  $region1: #{tpu_custom_call.1} parent=0
    #allocation2 [shape = 'u8[8192]{0}', space=vmem, size = 0x2000, scoped, tag = 'input window, operand 0, single buffered']
    #allocation3 [shape = 's32[1]{0}', space=sflag, size = 0x4, scoped, tag = 'scoped memory for tpu_custom_call.1']
    #allocation4 [shape = 's32[1]{0}', space=sflag, size = 0x4, scoped, tag = 'scoped memory for tpu_custom_call.1']
    #allocation5 [shape = 'u8[147456]{0}', space=vmem, size = 0x24000, scoped, tag = 'input window, operand 1, single buffered']
    #allocation6 [shape = 's32[1]{0}', space=sflag, size = 0x4, scoped, tag = 'scoped memory for tpu_custom_call.1']
    #allocation7 [shape = 'u8[4096]{0}', space=vmem, size = 0x1000, scoped, tag = 'input window, operand 2, single buffered']
    #allocation8 [shape = 'u8[1024]{0}', space=vmem, size = 0x400, scoped, tag = 'output window, operand 0, single buffered']
    %8 = vsyncpa [#allocation3], 0
    %9 = vsyncpa [#allocation6], 0
    %10 = vsyncpa [#allocation4], 0
    // Predicated region
    $region2: #{tpu_custom_call.1} parent=1 // pred_check
      _
    $region3: #{tpu_custom_call.1} parent=1 // pred_check_branch
      %12 = sbr.rel (0) target = $region5
    $region4: #{tpu_custom_call.1} parent=1 // pred_region
      %s14 = ssub.s32 256, 256
      %15 = vsyncadd [#allocation3], %s14
      %s16 = sshll.u32 [#allocation2], 4
      %s17 = int_to_ptr.vmem [resolvable:$true] %s16
      %22 = dma.hbm_to_vmem [thread:$0]  %s0, 256, %s17, [#allocation3], 128, 128, 8
    $region5: #{tpu_custom_call.1} parent=1 // pred_fallthru
      _
    // Predicated region
    $region6: #{tpu_custom_call.1} parent=1 // pred_check
      _
    $region7: #{tpu_custom_call.1} parent=1 // pred_check_branch
      %24 = sbr.rel (0) target = $region9
    $region8: #{tpu_custom_call.1} parent=1 // pred_region
      %s26 = ssub.s32 4608, 4608
      %27 = vsyncadd [#allocation6], %s26
      %s28 = sshll.u32 [#allocation5], 4
      %s29 = int_to_ptr.vmem [resolvable:$true] %s28
      %34 = dma.hbm_to_vmem [thread:$0]  %s1, 4608, %s29, [#allocation6], 128, 128, 8
    $region9: #{tpu_custom_call.1} parent=1 // pred_fallthru
      _
    // Predicated region
    $region10: #{tpu_custom_call.1} parent=1 // pred_check
      _
    $region11: #{tpu_custom_call.1} parent=1 // pred_check_branch
      %36 = sbr.rel (0) target = $region13
    $region12: #{tpu_custom_call.1} parent=1 // pred_region
      %s38 = ssub.s32 128, 128
      %39 = vsyncadd [#allocation6], %s38
      %s41 = sshll.u32 [#allocation7], 4
      %s42 = int_to_ptr.vmem [resolvable:$true] %s41
      %44 = dma.hbm_to_vmem [thread:$0]  %s2, 128, %s42, [#allocation6]
    $region13: #{tpu_custom_call.1} parent=1 // pred_fallthru
      _
    // Predicated region
    $region14: #{tpu_custom_call.1} parent=1 // pred_check
      _
    $region15: #{tpu_custom_call.1} parent=1 // pred_check_branch
      %46 = sbr.rel (0) target = $region17
    $region16: #{tpu_custom_call.1} parent=1 // pred_region
      %47 = dma.done [#allocation3], 256
    $region17: #{tpu_custom_call.1} parent=1 // pred_fallthru
      _
    // Predicated region
    $region18: #{tpu_custom_call.1} parent=1 // pred_check
      _
    $region19: #{tpu_custom_call.1} parent=1 // pred_check_branch
      %49 = sbr.rel (0) target = $region21
    $region20: #{tpu_custom_call.1} parent=1 // pred_region
      %50 = dma.done [#allocation6], 4608
    $region21: #{tpu_custom_call.1} parent=1 // pred_fallthru
      _
    // Predicated region
    $region22: #{tpu_custom_call.1} parent=1 // pred_check
      _
    $region23: #{tpu_custom_call.1} parent=1 // pred_check_branch
      %52 = sbr.rel (0) target = $region25
    $region24: #{tpu_custom_call.1} parent=1 // pred_region
      %53 = dma.done [#allocation6], 128
    $region25: #{tpu_custom_call.1} parent=1 // pred_fallthru
      _
    %v54 = vld [vmem:[#allocation2] sm:$0xff]
    %v55 = vld [vmem:[#allocation2 + $0x8] sm:$0xff]
    %v56 = vld [vmem:[#allocation5] sm:$0xff]
    %v57 = vld [vmem:[#allocation5 + $0x8] sm:$0xff]
    %v58 = vld [vmem:[#allocation5 + $0x10] sm:$0xff]
    %v59 = vld [vmem:[#allocation5 + $0x18] sm:$0xff]
    %v60 = vld [vmem:[#allocation5 + $0x20] sm:$0xff]
    %v61 = vld [vmem:[#allocation5 + $0x28] sm:$0xff]
    %v62 = vld [vmem:[#allocation5 + $0x30] sm:$0xff]
    %v63 = vld [vmem:[#allocation5 + $0x38] sm:$0xff]
    %v64 = vld [vmem:[#allocation5 + $0x40] sm:$0xff]
    %v65 = vld [vmem:[#allocation5 + $0x48] sm:$0xff]
    %v66 = vld [vmem:[#allocation5 + $0x50] sm:$0xff]
    %v67 = vld [vmem:[#allocation5 + $0x58] sm:$0xff]
    %v68 = vld [vmem:[#allocation5 + $0x60] sm:$0xff]
    %v69 = vld [vmem:[#allocation5 + $0x68] sm:$0xff]
    %v70 = vld [vmem:[#allocation5 + $0x70] sm:$0xff]
    %v71 = vld [vmem:[#allocation5 + $0x78] sm:$0xff]
    %v72 = vld [vmem:[#allocation5 + $0x80] sm:$0xff]
    %v73 = vld [vmem:[#allocation5 + $0x88] sm:$0xff]
    %v74 = vld [vmem:[#allocation5 + $0x90] sm:$0xff]
    %v75 = vld [vmem:[#allocation5 + $0x98] sm:$0xff]
    %v76 = vld [vmem:[#allocation5 + $0xa0] sm:$0xff]
    %v77 = vld [vmem:[#allocation5 + $0xa8] sm:$0xff]
    %v78 = vld [vmem:[#allocation5 + $0xb0] sm:$0xff]
    %v79 = vld [vmem:[#allocation5 + $0xb8] sm:$0xff]
    %v80 = vld [vmem:[#allocation5 + $0xc0] sm:$0xff]
    %v81 = vld [vmem:[#allocation5 + $0xc8] sm:$0xff]
    %v82 = vld [vmem:[#allocation5 + $0xd0] sm:$0xff]
    %v83 = vld [vmem:[#allocation5 + $0xd8] sm:$0xff]
    %v84 = vld [vmem:[#allocation5 + $0xe0] sm:$0xff]
    %v85 = vld [vmem:[#allocation5 + $0xe8] sm:$0xff]
    %v86 = vld [vmem:[#allocation5 + $0xf0] sm:$0xff]
    %v87 = vld [vmem:[#allocation5 + $0xf8] sm:$0xff]
    %v88 = vld [vmem:[#allocation5 + $0x100] sm:$0xff]
    %v89 = vld [vmem:[#allocation5 + $0x108] sm:$0xff]
    %v90 = vld [vmem:[#allocation5 + $0x110] sm:$0xff]
    %v91 = vld [vmem:[#allocation5 + $0x118] sm:$0xff]
    %v92 = vld [vmem:[#allocation7] sm:$0xff]
    %v93 = vlaneseq
    %v94 = vshrl.u32 %v93, 7
    %v95 = vsub.s32 0, %v94
    %v96 = vrot.slane %v92, %v95
    %vm97 = vcmask 261120
    %v99 = vsel %vm97, %v54, 0
    %v102 = vsel %vm97, %v55, 0
    %104 = vmatprep.subr.mxu0 0.0
    %105 = vmatpush1.msra.mxu0 0.0
    %106 = vmatprep.subr.mxu0 0.0
    %107 = vmatpush1.msra.mxu0 0.0
    %108 = vmatprep.subr.mxu0 0.0
    %109 = vmatpush1.msra.mxu0 0.0
    %110 = vmatprep.subr.mxu0 0.0
    %111 = vmatpush1.msra.mxu0 0.0
    %112 = vmatprep.subr.mxu0 0.0
    %113 = vmatpush1.msra.mxu0 0.0
    %114 = vmatprep.subr.mxu0 0.0
    %115 = vmatpush1.msra.mxu0 0.0
    %116 = vmatprep.subr.mxu0 0.0
    %117 = vmatpush1.msra.mxu0 0.0
    %118 = vmatprep.subr.mxu0 0.0
    %119 = vmatpush1.msra.mxu0 0.0
    %120 = vmatprep.subr.mxu0 0.0
    %121 = vmatpush1.msra.mxu0 0.0
    %122 = vmatprep.subr.mxu0 0.0
    %123 = vmatpush1.msra.mxu0 0.0
    %124 = vmatprep.subr.mxu0 0.0
    %125 = vmatpush1.msra.mxu0 0.0
    %126 = vmatprep.subr.mxu0 0.0
    %127 = vmatpush1.msra.mxu0 0.0
    %128 = vmatprep.subr.mxu0 0.0
    %129 = vmatpush1.msra.mxu0 %v59
    %130 = vmatprep.subr.mxu0 0.0
    %131 = vmatpush1.msra.mxu0 %v58
    %132 = vmatprep.subr.mxu0 0.0
    %133 = vmatpush1.msra.mxu0 %v57
    %134 = vmatprep.subr.mxu0 0.0
    %135 = vmatpush1.msra.mxu0 %v56
    %136 = vmatprep.subr.mxu0 0.0
    %137 = vmatpush2.msra.mxu0 0.0
    %138 = vmatprep.subr.mxu0 0.0
    %139 = vmatpush2.msra.mxu0 0.0
    %140 = vmatprep.subr.mxu0 0.0
    %141 = vmatpush2.msra.mxu0 0.0
    %142 = vmatprep.subr.mxu0 0.0
    %143 = vmatpush2.msra.mxu0 0.0
    %144 = vmatprep.subr.mxu0 0.0
    %145 = vmatpush2.msra.mxu0 0.0
    %146 = vmatprep.subr.mxu0 0.0
    %147 = vmatpush2.msra.mxu0 0.0
    %148 = vmatprep.subr.mxu0 0.0
    %149 = vmatpush2.msra.mxu0 0.0
    %150 = vmatprep.subr.mxu0 0.0
    %151 = vmatpush2.msra.mxu0 0.0
    %152 = vmatprep.subr.mxu0 0.0
    %153 = vmatpush2.msra.mxu0 0.0
    %154 = vmatprep.subr.mxu0 0.0
    %155 = vmatpush2.msra.mxu0 0.0
    %156 = vmatprep.subr.mxu0 0.0
    %157 = vmatpush2.msra.mxu0 0.0
    %158 = vmatprep.subr.mxu0 0.0
    %159 = vmatpush2.msra.mxu0 0.0
    %160 = vmatprep.subr.mxu0 0.0
    %161 = vmatpush2.msra.mxu0 0.0
    %162 = vmatprep.subr.mxu0 0.0
    %163 = vmatpush2.msra.mxu0 0.0
    %164 = vmatprep.subr.mxu0 0.0
    %165 = vmatpush2.msra.mxu0 0.0
    %166 = vmatprep.subr.mxu0 0.0
    %167 = vmatpush2.msra.mxu0 0.0
    %168 = vmatprep.mubr.f32.mxu0 0.0
    %169 = vmatmul.mubr.f32.gmra.mxu0 %v99
    %v170 = vpop.f32.mrf.mxu0
    %v171 = vadd.f32 %v96, %v170
    %v172 = vpop.f32.mrf.mxu0
    %173 = vmatprep.mubr.f32.mxu0 0.0
    %174 = vmatmul.mubr.f32.gmra.mxu0 %v102
    %v175 = vpop.f32.mrf.mxu0
    %v176 = vadd.f32 %v96, %v175
    %v177 = vpop.f32.mrf.mxu0
    %178 = vdwg.mxu0
    %v179 = vmax.f32 %v171, 0.0
    %v180 = vmax.f32 %v176, 0.0
    %v181 = vrot.slane %v179, 4
    %v182 = vadd.f32 %v179, %v181
    %v183 = vrot.slane %v182, 2
    %v184 = vadd.f32 %v182, %v183
    %v185 = vrot.slane %v184, 1
    %v186 = vadd.f32 %v184, %v185
    %v187 = vrot.slane %v180, 4
    %v188 = vadd.f32 %v180, %v187
    %v189 = vrot.slane %v188, 2
    %v190 = vadd.f32 %v188, %v189
    %v191 = vrot.slane %v190, 1
    %v192 = vadd.f32 %v190, %v191
    %v193 = vlaneseq
    %v194 = vshrl.u32 %v193, 7
    %v195 = vsub.s32 1, %v194
    %v196 = vrot.slane %v92, %v195
    %vm199 = vcmask 1041409
    %v200 = vsel %vm199, %v192, %v186
    %202 = vmatprep.subr.mxu0 0.0
    %203 = vmatpush1.msra.mxu0 %v75
    %204 = vmatprep.subr.mxu0 0.0
    %205 = vmatpush1.msra.mxu0 %v74
    %206 = vmatprep.subr.mxu0 0.0
    %207 = vmatpush1.msra.mxu0 %v73
    %208 = vmatprep.subr.mxu0 0.0
    %209 = vmatpush1.msra.mxu0 %v72
    %210 = vmatprep.subr.mxu0 0.0
    %211 = vmatpush1.msra.mxu0 %v71
    %212 = vmatprep.subr.mxu0 0.0
    %213 = vmatpush1.msra.mxu0 %v70
    %214 = vmatprep.subr.mxu0 0.0
    %215 = vmatpush1.msra.mxu0 %v69
    %216 = vmatprep.subr.mxu0 0.0
    %217 = vmatpush1.msra.mxu0 %v68
    %218 = vmatprep.subr.mxu0 0.0
    %219 = vmatpush1.msra.mxu0 %v67
    %220 = vmatprep.subr.mxu0 0.0
    %221 = vmatpush1.msra.mxu0 %v66
    %222 = vmatprep.subr.mxu0 0.0
    %223 = vmatpush1.msra.mxu0 %v65
    %224 = vmatprep.subr.mxu0 0.0
    %225 = vmatpush1.msra.mxu0 %v64
    %226 = vmatprep.subr.mxu0 0.0
    %227 = vmatpush1.msra.mxu0 %v63
    %228 = vmatprep.subr.mxu0 0.0
    %229 = vmatpush1.msra.mxu0 %v62
    %230 = vmatprep.subr.mxu0 0.0
    %231 = vmatpush1.msra.mxu0 %v61
    %232 = vmatprep.subr.mxu0 0.0
    %233 = vmatpush1.msra.mxu0 %v60
    %234 = vmatprep.subr.mxu0 0.0
    %235 = vmatpush2.msra.mxu0 0.0
    %236 = vmatprep.subr.mxu0 0.0
    %237 = vmatpush2.msra.mxu0 0.0
    %238 = vmatprep.subr.mxu0 0.0
    %239 = vmatpush2.msra.mxu0 0.0
    %240 = vmatprep.subr.mxu0 0.0
    %241 = vmatpush2.msra.mxu0 0.0
    %242 = vmatprep.subr.mxu0 0.0
    %243 = vmatpush2.msra.mxu0 0.0
    %244 = vmatprep.subr.mxu0 0.0
    %245 = vmatpush2.msra.mxu0 0.0
    %246 = vmatprep.subr.mxu0 0.0
    %247 = vmatpush2.msra.mxu0 0.0
    %248 = vmatprep.subr.mxu0 0.0
    %249 = vmatpush2.msra.mxu0 0.0
    %250 = vmatprep.subr.mxu0 0.0
    %251 = vmatpush2.msra.mxu0 0.0
    %252 = vmatprep.subr.mxu0 0.0
    %253 = vmatpush2.msra.mxu0 0.0
    %254 = vmatprep.subr.mxu0 0.0
    %255 = vmatpush2.msra.mxu0 0.0
    %256 = vmatprep.subr.mxu0 0.0
    %257 = vmatpush2.msra.mxu0 0.0
    %258 = vmatprep.subr.mxu0 0.0
    %259 = vmatpush2.msra.mxu0 0.0
    %260 = vmatprep.subr.mxu0 0.0
    %261 = vmatpush2.msra.mxu0 0.0
    %262 = vmatprep.subr.mxu0 0.0
    %263 = vmatpush2.msra.mxu0 0.0
    %264 = vmatprep.subr.mxu0 0.0
    %265 = vmatpush2.msra.mxu0 0.0
    %266 = vmatprep.mubr.f32.mxu0 0.0
    %267 = vmatmul.mubr.f32.gmra.mxu0 %v200
    %v268 = vpop.f32.mrf.mxu0
    %v269 = vadd.f32 %v196, %v268
    %v270 = vpop.f32.mrf.mxu0
    %271 = vdwg.mxu0
    %v272 = vmax.f32 %v269, 0.0
    %v273 = vlaneseq
    %v274 = vshrl.u32 %v273, 7
    %v275 = vsub.s32 2, %v274
    %v276 = vrot.slane %v92, %v275
    %277 = vmatprep.subr.mxu0 0.0
    %278 = vmatpush1.msra.mxu0 %v91
    %279 = vmatprep.subr.mxu0 0.0
    %280 = vmatpush1.msra.mxu0 %v90
    %281 = vmatprep.subr.mxu0 0.0
    %282 = vmatpush1.msra.mxu0 %v89
    %283 = vmatprep.subr.mxu0 0.0
    %284 = vmatpush1.msra.mxu0 %v88
    %285 = vmatprep.subr.mxu0 0.0
    %286 = vmatpush1.msra.mxu0 %v87
    %287 = vmatprep.subr.mxu0 0.0
    %288 = vmatpush1.msra.mxu0 %v86
    %289 = vmatprep.subr.mxu0 0.0
    %290 = vmatpush1.msra.mxu0 %v85
    %291 = vmatprep.subr.mxu0 0.0
    %292 = vmatpush1.msra.mxu0 %v84
    %293 = vmatprep.subr.mxu0 0.0
    %294 = vmatpush1.msra.mxu0 %v83
    %295 = vmatprep.subr.mxu0 0.0
    %296 = vmatpush1.msra.mxu0 %v82
    %297 = vmatprep.subr.mxu0 0.0
    %298 = vmatpush1.msra.mxu0 %v81
    %299 = vmatprep.subr.mxu0 0.0
    %300 = vmatpush1.msra.mxu0 %v80
    %301 = vmatprep.subr.mxu0 0.0
    %302 = vmatpush1.msra.mxu0 %v79
    %303 = vmatprep.subr.mxu0 0.0
    %304 = vmatpush1.msra.mxu0 %v78
    %305 = vmatprep.subr.mxu0 0.0
    %306 = vmatpush1.msra.mxu0 %v77
    %307 = vmatprep.subr.mxu0 0.0
    %308 = vmatpush1.msra.mxu0 %v76
    %309 = vmatprep.subr.mxu0 0.0
    %310 = vmatpush2.msra.mxu0 0.0
    %311 = vmatprep.subr.mxu0 0.0
    %312 = vmatpush2.msra.mxu0 0.0
    %313 = vmatprep.subr.mxu0 0.0
    %314 = vmatpush2.msra.mxu0 0.0
    %315 = vmatprep.subr.mxu0 0.0
    %316 = vmatpush2.msra.mxu0 0.0
    %317 = vmatprep.subr.mxu0 0.0
    %318 = vmatpush2.msra.mxu0 0.0
    %319 = vmatprep.subr.mxu0 0.0
    %320 = vmatpush2.msra.mxu0 0.0
    %321 = vmatprep.subr.mxu0 0.0
    %322 = vmatpush2.msra.mxu0 0.0
    %323 = vmatprep.subr.mxu0 0.0
    %324 = vmatpush2.msra.mxu0 0.0
    %325 = vmatprep.subr.mxu0 0.0
    %326 = vmatpush2.msra.mxu0 0.0
    %327 = vmatprep.subr.mxu0 0.0
    %328 = vmatpush2.msra.mxu0 0.0
    %329 = vmatprep.subr.mxu0 0.0
    %330 = vmatpush2.msra.mxu0 0.0
    %331 = vmatprep.subr.mxu0 0.0
    %332 = vmatpush2.msra.mxu0 0.0
    %333 = vmatprep.subr.mxu0 0.0
    %334 = vmatpush2.msra.mxu0 0.0
    %335 = vmatprep.subr.mxu0 0.0
    %336 = vmatpush2.msra.mxu0 0.0
    %337 = vmatprep.subr.mxu0 0.0
    %338 = vmatpush2.msra.mxu0 0.0
    %339 = vmatprep.subr.mxu0 0.0
    %340 = vmatpush2.msra.mxu0 0.0
    %341 = vmatprep.mubr.f32.mxu0 0.0
    %342 = vmatmul.mubr.f32.gmra.mxu0 %v272
    %v343 = vpop.f32.mrf.mxu0
    %v344 = vadd.f32 %v276, %v343
    %v345 = vpop.f32.mrf.mxu0
    %346 = vdwg.mxu0
    %347 = vst [vmem:[#allocation8] sm:$0x3] %v344
    // Predicated region
    $region26: #{tpu_custom_call.1} parent=1 // pred_check
      _
    $region27: #{tpu_custom_call.1} parent=1 // pred_check_branch
      %349 = sbr.rel (0) target = $region29
    $region28: #{tpu_custom_call.1} parent=1 // pred_region
      %s351 = ssub.s32 32, 32
      %352 = vsyncadd [#allocation4], %s351
      %s354 = sshll.u32 [#allocation8], 4
      %s355 = int_to_ptr.vmem [resolvable:$true] %s354
      %357 = dma.vmem_to_hbm [thread:$0]  %s355, 32, %s3, [#allocation4]
    $region29: #{tpu_custom_call.1} parent=1 // pred_fallthru
      _
    // Predicated region
    $region30: #{tpu_custom_call.1} parent=1 // pred_check
      _
    $region31: #{tpu_custom_call.1} parent=1 // pred_check_branch
      %359 = sbr.rel (0) target = $region33
    $region32: #{tpu_custom_call.1} parent=1 // pred_region
      %360 = dma.done [#allocation4], 32
    $region33: #{tpu_custom_call.1} parent=1 // pred_fallthru
      _
    %361 = vsyncpa [#allocation3], 1
    %362 = vsyncpa [#allocation6], 1
    %363 = vsyncpa [#allocation4], 1

</llo_original>
